<compile_context>
chip_gen: v5e
topology: v5e:2x2
jax: 0.10.0
libtpu: 0.0.40
codegen_flags: <defaults>
</compile_context>

<pallas_src>
import functools

import jax
import jax.numpy as jnp
from jax.experimental import pallas as pl
from jax.experimental.pallas import tpu as pltpu


def _patch_expand_kernel(x_ref, w_ref, seg_ref, gid_ref, g_ref, b_ref, o_ref,
                         *, th, W, D, c_out, eps):
    C2 = 2 * D
    R = th * W

    # One augmented MXU matmul: columns [0:2D] = expand(x) (channel order
    # (p1, p2, c)), columns [2D:2D+4] = the per-group LayerNorm means.
    y_aug = jnp.dot(x_ref[...], w_ref[...], preferred_element_type=jnp.float32)  # (R, 2D+4)
    y = y_aug[:, :C2]                                   # (R, 2D) f32
    mean4 = y_aug[:, C2:C2 + 4]                         # (R, 4)  group means

    # Group second moments: one narrow (N=4) MXU reduce — a single padded
    # column pass (vs. the old reduce + 2 broadcast matmuls).
    ssq4 = jnp.dot(y * y, seg_ref[...], preferred_element_type=jnp.float32)      # (R, 4)
    var4 = jnp.maximum(ssq4 * (1.0 / c_out) - mean4 * mean4, 0.0)                # E[y^2]-E[y]^2
    rstd4 = jax.lax.rsqrt(var4 + eps)                   # (R, 4)

    # Broadcast the 4 per-group scalars across their c_out lanes with VPU
    # selects (no MXU).  gid_ref holds lane -> group id (0..3).
    gidb = jnp.broadcast_to(gid_ref[...], (R, C2))      # (R, 2D) int32

    def bcast(s4):                                      # (R, 4) -> (R, 2D)
        return jnp.where(gidb == 0, s4[:, 0:1],
               jnp.where(gidb == 1, s4[:, 1:2],
               jnp.where(gidb == 2, s4[:, 2:3], s4[:, 3:4])))

    mean = bcast(mean4)
    rstd = bcast(rstd4)
    out = (y - mean) * rstd * g_ref[...] + b_ref[...]   # (R, 2D) f32

    # Fused pixel shuffle.  Channels of `out` are ordered (p1, p2, c):
    #   out[h*W + w, p1*D + (p2*c_out + ch)]  ->  o_ref[h, p1, w, p2*c_out + ch]
    # so each half (p1) is just a leading-dim split (th*W, D) -> (th, W, D).
    for p1 in range(2):                                 # static unroll
        half = out[:, p1 * D:(p1 + 1) * D]              # (R, D)
        o_ref[:, p1, :, :] = half.reshape(th, W, D).astype(o_ref.dtype)


def _vmem_budgets():
    """Generation-aware (picker budget, vmem_limit) in bytes."""
    cap = None
    try:
        cap = getattr(pltpu.get_tpu_info(), "vmem_capacity_bytes", None)
    except Exception:
        cap = None
    big = cap is not None and cap >= 96 * 1024 * 1024
    try:
        kind = jax.devices()[0].device_kind.lower()
        if ("v5" in kind) or ("v6" in kind):
            big = True          # 128 MiB VMEM parts
        if "7" in kind:
            big = False         # v7x: 64 MiB per TensorCore
    except Exception:
        pass
    if big:
        budget, limit = 64 << 20, 96 << 20
    else:
        budget, limit = 24 << 20, 40 << 20
    if cap is not None:         # final clamp for unusual parts
        budget = min(budget, int(cap * 0.45))
        limit = min(limit, int(cap * 0.75))
    return budget, limit


def _pick_tile_rows(BH, W, D, itemsize, vmem_budget_bytes, tile_tokens):
    """How many (b, h) rows each grid step handles (must divide B*H)."""
    pad128 = lambda n: -(-n // 128) * 128
    pad8 = lambda n: -(-n // 8) * 8
    C2p = pad128(2 * D + 4)
    Dp = pad128(D)
    # Resident constants (conservatively counted double-buffered).
    const_bytes = 2 * (D * C2p * itemsize          # augmented expand weight
                       + 2 * D * 128 * 4           # (2D, 4) group-sum selector (lane padded)
                       + 3 * 8 * C2p * 4)          # gid / gamma / beta rows (sublane padded)
    # Per-(b,h)-row VMEM cost, including lane padding and live f32 temporaries.
    per_row = (2 * W * Dp * itemsize               # x block (x2 pipeline buffers)
               + 2 * 2 * pad8(W) * Dp * itemsize   # out block (x2 buffers)
               + 6 * W * C2p * 4)                  # f32 temps: y_aug, mean, rstd, out, ...
    avail = max(vmem_budget_bytes - const_bytes, per_row)
    want = max(1, min(avail // per_row, max(1, tile_tokens // max(W, 1)), BH))

    # Hard constraint: the x block's sublane dim (th*W) must be a multiple of 8
    # unless the block covers the whole array (single grid step).
    cands = [d for d in range(1, BH + 1)
             if BH % d == 0 and ((d * W) % 8 == 0 or d == BH)]
    fitting = [d for d in cands if d <= want]
    pool = fitting if fitting else [min(cands)]

    def score(d):
        steps = BH // d
        return (steps >= 2 or BH == 1,        # >= 2 steps keeps both v7x TCs busy
                steps % 2 == 0 or BH == 1,    # even step count: no megacore tail imbalance
                d)                            # then: biggest tile
    return max(pool, key=score)


def patch_expand(x, w_t, gamma, beta, H, W, *, tile_tokens=4096,
                 vmem_budget_bytes=None, vmem_limit_bytes=None, eps=1e-5):
    """PatchExpand forward.

    x:     (B, H*W, D)  tokens, channel-last (f32 or bf16)
    w_t:   (D, 2*D)     == nn.Linear(dim, 2*dim, bias=False).weight.T
    gamma: (D//2,) or (1, D//2)  LayerNorm weight
    beta:  (D//2,) or (1, D//2)  LayerNorm bias
    returns (B, 4*H*W, D//2) in x.dtype
    """
    B, L, D = x.shape
    assert L == H * W, f"input feature has wrong size L : {L}, H : {H}, W : {W}"
    C2 = w_t.shape[1]
    assert w_t.shape == (D, C2) and C2 == 2 * D, (w_t.shape, D)
    c_out = C2 // 4

    f32 = jnp.float32
    BH = B * H

    auto_budget, auto_limit = _vmem_budgets()
    budget = vmem_budget_bytes or auto_budget
    limit = vmem_limit_bytes or auto_limit

    itemsize = jnp.dtype(x.dtype).itemsize
    th = _pick_tile_rows(BH, W, D, itemsize, budget, tile_tokens)
    grid = (BH // th,)

    x2 = x.reshape(BH * W, D)

    # Constant operands (constant index_map => fetched once, stay resident).
    #  * augmented weight: [w_t | group-mean columns] so the LN means come out
    #    of the main MXU pass for free;
    #  * seg: 0/1 selector for the group sum-of-squares reduce;
    #  * gid_row: lane -> group id for the off-MXU stat broadcast;
    #  * gamma/beta tiled x4 over the (p1, p2, c) channel order.
    w_f = jnp.asarray(w_t, f32)
    w_mean = w_f.reshape(D, 4, c_out).mean(axis=2)                         # (D, 4)
    w_aug = jnp.concatenate([jnp.asarray(w_t),
                             w_mean.astype(w_t.dtype)], axis=1)            # (D, 2D+4)

    gids = jnp.arange(C2, dtype=jnp.int32) // c_out
    seg = (gids[:, None] == jnp.arange(4, dtype=jnp.int32)[None, :]).astype(f32)  # (2D, 4)
    gid_row = gids.reshape(1, C2)
    g_rep = jnp.tile(jnp.asarray(gamma, f32).reshape(-1), 4).reshape(1, C2)
    b_rep = jnp.tile(jnp.asarray(beta, f32).reshape(-1), 4).reshape(1, C2)

    kernel = functools.partial(_patch_expand_kernel, th=th, W=W, D=D,
                               c_out=c_out, eps=eps)

    out4 = pl.pallas_call(
        kernel,
        out_shape=jax.ShapeDtypeStruct((BH, 2, W, D), x.dtype),
        grid_spec=pltpu.PrefetchScalarGridSpec(
            num_scalar_prefetch=0,
            grid=grid,
            in_specs=[
                pl.BlockSpec((th * W, D), lambda i: (i, 0)),      # token-row tile
                pl.BlockSpec((D, C2 + 4), lambda i: (0, 0)),      # [w_t | w_mean], resident
                pl.BlockSpec((C2, 4), lambda i: (0, 0)),          # group-sum selector
                pl.BlockSpec((1, C2), lambda i: (0, 0)),          # lane -> group id
                pl.BlockSpec((1, C2), lambda i: (0, 0)),          # LN gamma, tiled x4
                pl.BlockSpec((1, C2), lambda i: (0, 0)),          # LN beta,  tiled x4
            ],
            out_specs=pl.BlockSpec((th, 2, W, D), lambda i: (i, 0, 0, 0)),
        ),
        compiler_params=pltpu.CompilerParams(
            dimension_semantics=("parallel",),
            vmem_limit_bytes=limit,
        ),
    )(x2, w_aug, seg, gid_row, g_rep, b_rep)

    # (BH, 2, W, D) row-major order is (b, h, p1, w, p2, c): contiguous reshape, free.
    return out4.reshape(B, 2 * H * 2 * W, c_out)


if __name__ == "__main__":
    key = jax.random.PRNGKey(0)
    B, H, W, dim = 2, 8, 8, 32
    k1, k2, k3, k4 = jax.random.split(key, 4)

    x = jax.random.normal(k1, (B, H * W, dim), dtype=jnp.float32)
    # nn.Linear(dim, 2*dim, bias=False): weight (2*dim, dim); kernel takes its transpose.
    w = jax.random.normal(k2, (2 * dim, dim), dtype=jnp.float32) / jnp.sqrt(dim)
    w_t = jnp.asarray(w.T)
    gamma = jax.random.normal(k3, (dim // 2,), dtype=jnp.float32)
    beta = jax.random.normal(k4, (dim // 2,), dtype=jnp.float32)

    out = patch_expand(x, w_t, gamma, beta, H, W)
    out = jax.block_until_ready(out)

    # Pure-JAX reference with the PyTorch module's semantics.
    c_out = dim // 2
    y_ref = jnp.dot(x, w_t, precision=jax.lax.Precision.HIGHEST)
    y_ref = y_ref.reshape(B, H, W, 2, 2, c_out)
    y_ref = jnp.transpose(y_ref, (0, 1, 3, 2, 4, 5)).reshape(B, 4 * H * W, c_out)
    mu = y_ref.mean(-1, keepdims=True)
    var = ((y_ref - mu) ** 2).mean(-1, keepdims=True)
    ref = (y_ref - mu) * jax.lax.rsqrt(var + 1e-5) * gamma.reshape(1, 1, c_out) \
        + beta.reshape(1, 1, c_out)

    assert out.shape == (B, 4 * H * W, c_out), out.shape
    err = jnp.max(jnp.abs(out - ref))
    assert jnp.allclose(out, ref, atol=2e-4, rtol=2e-4), f"mismatch vs reference: {err}"
    print("KERNEL_OK")
</pallas_src>

<mosaic_0001>
module attributes {stable_mosaic.version = 11 : i64} {
  func.func @_patch_expand_kernel(%arg0: i32, %arg1: memref<64x32xf32, #tpu.memory_space<vmem>>, %arg2: memref<32x68xf32, #tpu.memory_space<vmem>>, %arg3: memref<64x4xf32, #tpu.memory_space<vmem>>, %arg4: memref<1x64xi32, #tpu.memory_space<vmem>>, %arg5: memref<1x64xf32, #tpu.memory_space<vmem>>, %arg6: memref<1x64xf32, #tpu.memory_space<vmem>>, %arg7: memref<8x2x8x32xf32, #tpu.memory_space<vmem>>) attributes {dimension_semantics = [#tpu.dimension_semantics<parallel>], iteration_bounds = array<i64: 2>, scalar_prefetch = 0 : i64, scratch_operands = 0 : i64, tpu.core_type = #tpu.core_type<tc>, window_params = [{transform_indices = @transform_0, window_bounds = array<i64: 64, 32>}, {pipeline_mode = #tpu.pipeline_mode<synchronous>, transform_indices = @transform_1, window_bounds = array<i64: 32, 68>}, {pipeline_mode = #tpu.pipeline_mode<synchronous>, transform_indices = @transform_2, window_bounds = array<i64: 64, 4>}, {pipeline_mode = #tpu.pipeline_mode<synchronous>, transform_indices = @transform_3, window_bounds = array<i64: 1, 64>}, {pipeline_mode = #tpu.pipeline_mode<synchronous>, transform_indices = @transform_4, window_bounds = array<i64: 1, 64>}, {pipeline_mode = #tpu.pipeline_mode<synchronous>, transform_indices = @transform_5, window_bounds = array<i64: 1, 64>}, {transform_indices = @transform_6, window_bounds = array<i64: 8, 2, 8, 32>}]} {
    %c0 = arith.constant 0 : index
    %c0_0 = arith.constant 0 : index
    %0 = vector.load %arg1[%c0, %c0_0] : memref<64x32xf32, #tpu.memory_space<vmem>>, vector<64x32xf32>
    %c0_1 = arith.constant 0 : index
    %c0_2 = arith.constant 0 : index
    %1 = vector.load %arg2[%c0_1, %c0_2] : memref<32x68xf32, #tpu.memory_space<vmem>>, vector<32x68xf32>
    %cst = arith.constant dense<0.000000e+00> : vector<64x68xf32>
    %2 = tpu.matmul %0, %1, %cst {dimension_numbers = #tpu.dot_dimension_numbers<[1], [0], [0], [1], [0, 0, 1, 1], [], []>} : vector<64x32xf32>, vector<32x68xf32>, vector<64x68xf32> -> vector<64x68xf32>
    %3 = vector.extract_strided_slice %2 {offsets = [0, 0], sizes = [64, 64], strides = [1, 1]} : vector<64x68xf32> to vector<64x64xf32>
    %4 = vector.extract_strided_slice %2 {offsets = [0, 64], sizes = [64, 4], strides = [1, 1]} : vector<64x68xf32> to vector<64x4xf32>
    %5 = arith.mulf %3, %3 : vector<64x64xf32>
    %c0_3 = arith.constant 0 : index
    %c0_4 = arith.constant 0 : index
    %6 = vector.load %arg3[%c0_3, %c0_4] : memref<64x4xf32, #tpu.memory_space<vmem>>, vector<64x4xf32>
    %cst_5 = arith.constant dense<0.000000e+00> : vector<64x4xf32>
    %7 = tpu.matmul %5, %6, %cst_5 {dimension_numbers = #tpu.dot_dimension_numbers<[1], [0], [0], [1], [0, 0, 1, 1], [], []>} : vector<64x64xf32>, vector<64x4xf32>, vector<64x4xf32> -> vector<64x4xf32>
    %cst_6 = arith.constant 6.250000e-02 : f32
    %8 = vector.broadcast %cst_6 : f32 to vector<64x4xf32>
    %9 = arith.mulf %7, %8 : vector<64x4xf32>
    %10 = arith.mulf %4, %4 : vector<64x4xf32>
    %11 = arith.subf %9, %10 : vector<64x4xf32>
    %cst_7 = arith.constant 0.000000e+00 : f32
    %12 = vector.broadcast %cst_7 : f32 to vector<64x4xf32>
    %13 = arith.maximumf %11, %12 : vector<64x4xf32>
    %cst_8 = arith.constant 9.99999974E-6 : f32
    %14 = vector.broadcast %cst_8 : f32 to vector<64x4xf32>
    %15 = arith.addf %13, %14 : vector<64x4xf32>
    %16 = math.rsqrt %15 : vector<64x4xf32>
    %c0_9 = arith.constant 0 : index
    %c0_10 = arith.constant 0 : index
    %17 = vector.load %arg4[%c0_9, %c0_10] : memref<1x64xi32, #tpu.memory_space<vmem>>, vector<1x64xi32>
    %18 = vector.shape_cast %17 : vector<1x64xi32> to vector<1x64xi32>
    %19 = vector.broadcast %18 : vector<1x64xi32> to vector<64x64xi32>
    %c0_i32 = arith.constant 0 : i32
    %20 = vector.broadcast %c0_i32 : i32 to vector<64x64xi32>
    %21 = arith.cmpi eq, %19, %20 : vector<64x64xi32>
    %22 = vector.extract_strided_slice %4 {offsets = [0, 0], sizes = [64, 1], strides = [1, 1]} : vector<64x4xf32> to vector<64x1xf32>
    %c1_i32 = arith.constant 1 : i32
    %23 = vector.broadcast %c1_i32 : i32 to vector<64x64xi32>
    %24 = arith.cmpi eq, %19, %23 : vector<64x64xi32>
    %25 = vector.extract_strided_slice %4 {offsets = [0, 1], sizes = [64, 1], strides = [1, 1]} : vector<64x4xf32> to vector<64x1xf32>
    %c2_i32 = arith.constant 2 : i32
    %26 = vector.broadcast %c2_i32 : i32 to vector<64x64xi32>
    %27 = arith.cmpi eq, %19, %26 : vector<64x64xi32>
    %28 = vector.extract_strided_slice %4 {offsets = [0, 2], sizes = [64, 1], strides = [1, 1]} : vector<64x4xf32> to vector<64x1xf32>
    %29 = vector.extract_strided_slice %4 {offsets = [0, 3], sizes = [64, 1], strides = [1, 1]} : vector<64x4xf32> to vector<64x1xf32>
    %30 = vector.shape_cast %28 : vector<64x1xf32> to vector<64x1xf32>
    %31 = vector.broadcast %30 : vector<64x1xf32> to vector<64x64xf32>
    %32 = vector.shape_cast %29 : vector<64x1xf32> to vector<64x1xf32>
    %33 = vector.broadcast %32 : vector<64x1xf32> to vector<64x64xf32>
    %34 = arith.select %27, %31, %33 : vector<64x64xi1>, vector<64x64xf32>
    %35 = vector.shape_cast %25 : vector<64x1xf32> to vector<64x1xf32>
    %36 = vector.broadcast %35 : vector<64x1xf32> to vector<64x64xf32>
    %37 = arith.select %24, %36, %34 : vector<64x64xi1>, vector<64x64xf32>
    %38 = vector.shape_cast %22 : vector<64x1xf32> to vector<64x1xf32>
    %39 = vector.broadcast %38 : vector<64x1xf32> to vector<64x64xf32>
    %40 = arith.select %21, %39, %37 : vector<64x64xi1>, vector<64x64xf32>
    %c0_i32_11 = arith.constant 0 : i32
    %41 = vector.broadcast %c0_i32_11 : i32 to vector<64x64xi32>
    %42 = arith.cmpi eq, %19, %41 : vector<64x64xi32>
    %43 = vector.extract_strided_slice %16 {offsets = [0, 0], sizes = [64, 1], strides = [1, 1]} : vector<64x4xf32> to vector<64x1xf32>
    %c1_i32_12 = arith.constant 1 : i32
    %44 = vector.broadcast %c1_i32_12 : i32 to vector<64x64xi32>
    %45 = arith.cmpi eq, %19, %44 : vector<64x64xi32>
    %46 = vector.extract_strided_slice %16 {offsets = [0, 1], sizes = [64, 1], strides = [1, 1]} : vector<64x4xf32> to vector<64x1xf32>
    %c2_i32_13 = arith.constant 2 : i32
    %47 = vector.broadcast %c2_i32_13 : i32 to vector<64x64xi32>
    %48 = arith.cmpi eq, %19, %47 : vector<64x64xi32>
    %49 = vector.extract_strided_slice %16 {offsets = [0, 2], sizes = [64, 1], strides = [1, 1]} : vector<64x4xf32> to vector<64x1xf32>
    %50 = vector.extract_strided_slice %16 {offsets = [0, 3], sizes = [64, 1], strides = [1, 1]} : vector<64x4xf32> to vector<64x1xf32>
    %51 = vector.shape_cast %49 : vector<64x1xf32> to vector<64x1xf32>
    %52 = vector.broadcast %51 : vector<64x1xf32> to vector<64x64xf32>
    %53 = vector.shape_cast %50 : vector<64x1xf32> to vector<64x1xf32>
    %54 = vector.broadcast %53 : vector<64x1xf32> to vector<64x64xf32>
    %55 = arith.select %48, %52, %54 : vector<64x64xi1>, vector<64x64xf32>
    %56 = vector.shape_cast %46 : vector<64x1xf32> to vector<64x1xf32>
    %57 = vector.broadcast %56 : vector<64x1xf32> to vector<64x64xf32>
    %58 = arith.select %45, %57, %55 : vector<64x64xi1>, vector<64x64xf32>
    %59 = vector.shape_cast %43 : vector<64x1xf32> to vector<64x1xf32>
    %60 = vector.broadcast %59 : vector<64x1xf32> to vector<64x64xf32>
    %61 = arith.select %42, %60, %58 : vector<64x64xi1>, vector<64x64xf32>
    %62 = arith.subf %3, %40 : vector<64x64xf32>
    %63 = arith.mulf %62, %61 : vector<64x64xf32>
    %c0_14 = arith.constant 0 : index
    %c0_15 = arith.constant 0 : index
    %64 = vector.load %arg5[%c0_14, %c0_15] : memref<1x64xf32, #tpu.memory_space<vmem>>, vector<1x64xf32>
    %65 = vector.broadcast %64 : vector<1x64xf32> to vector<64x64xf32>
    %66 = arith.mulf %63, %65 : vector<64x64xf32>
    %c0_16 = arith.constant 0 : index
    %c0_17 = arith.constant 0 : index
    %67 = vector.load %arg6[%c0_16, %c0_17] : memref<1x64xf32, #tpu.memory_space<vmem>>, vector<1x64xf32>
    %68 = vector.broadcast %67 : vector<1x64xf32> to vector<64x64xf32>
    %69 = arith.addf %66, %68 : vector<64x64xf32>
    %70 = vector.extract_strided_slice %69 {offsets = [0, 0], sizes = [64, 32], strides = [1, 1]} : vector<64x64xf32> to vector<64x32xf32>
    %71 = vector.shape_cast %70 : vector<64x32xf32> to vector<8x8x32xf32>
    %c0_18 = arith.constant 0 : index
    %c0_19 = arith.constant 0 : index
    %c0_20 = arith.constant 0 : index
    %c0_21 = arith.constant 0 : index
    %72 = vector.load %arg7[%c0_18, %c0_19, %c0_20, %c0_21] : memref<8x2x8x32xf32, #tpu.memory_space<vmem>>, vector<8x1x8x32xf32>
    %73 = vector.shape_cast %72 : vector<8x1x8x32xf32> to vector<8x8x32xf32>
    %74 = vector.shape_cast %71 : vector<8x8x32xf32> to vector<8x1x8x32xf32>
    tpu.vector_store %arg7[%c0_18, %c0_19, %c0_20, %c0_21], %74 {strides = array<i32>} : memref<8x2x8x32xf32, #tpu.memory_space<vmem>>, vector<8x1x8x32xf32>,
    %75 = vector.extract_strided_slice %69 {offsets = [0, 32], sizes = [64, 32], strides = [1, 1]} : vector<64x64xf32> to vector<64x32xf32>
    %76 = vector.shape_cast %75 : vector<64x32xf32> to vector<8x8x32xf32>
    %c0_22 = arith.constant 0 : index
    %c1 = arith.constant 1 : index
    %c0_23 = arith.constant 0 : index
    %c0_24 = arith.constant 0 : index
    %77 = vector.load %arg7[%c0_22, %c1, %c0_23, %c0_24] : memref<8x2x8x32xf32, #tpu.memory_space<vmem>>, vector<8x1x8x32xf32>
    %78 = vector.shape_cast %77 : vector<8x1x8x32xf32> to vector<8x8x32xf32>
    %79 = vector.shape_cast %76 : vector<8x8x32xf32> to vector<8x1x8x32xf32>
    tpu.vector_store %arg7[%c0_22, %c1, %c0_23, %c0_24], %79 {strides = array<i32>} : memref<8x2x8x32xf32, #tpu.memory_space<vmem>>, vector<8x1x8x32xf32>,
    return
  }
  func.func @transform_0(%arg0: i32) -> (i32, i32) {
    %c0_i32 = arith.constant 0 : i32
    %c0_i32_0 = arith.constant 0 : i32
    return %arg0, %c0_i32 : i32, i32
  }
  func.func @transform_1(%arg0: i32) -> (i32, i32) {
    %c0_i32 = arith.constant 0 : i32
    %c0_i32_0 = arith.constant 0 : i32
    %c0_i32_1 = arith.constant 0 : i32
    return %c0_i32, %c0_i32_0 : i32, i32
  }
  func.func @transform_2(%arg0: i32) -> (i32, i32) {
    %c0_i32 = arith.constant 0 : i32
    %c0_i32_0 = arith.constant 0 : i32
    %c0_i32_1 = arith.constant 0 : i32
    return %c0_i32, %c0_i32_0 : i32, i32
  }
  func.func @transform_3(%arg0: i32) -> (i32, i32) {
    %c0_i32 = arith.constant 0 : i32
    %c0_i32_0 = arith.constant 0 : i32
    %c0_i32_1 = arith.constant 0 : i32
    return %c0_i32, %c0_i32_0 : i32, i32
  }
  func.func @transform_4(%arg0: i32) -> (i32, i32) {
    %c0_i32 = arith.constant 0 : i32
    %c0_i32_0 = arith.constant 0 : i32
    %c0_i32_1 = arith.constant 0 : i32
    return %c0_i32, %c0_i32_0 : i32, i32
  }
  func.func @transform_5(%arg0: i32) -> (i32, i32) {
    %c0_i32 = arith.constant 0 : i32
    %c0_i32_0 = arith.constant 0 : i32
    %c0_i32_1 = arith.constant 0 : i32
    return %c0_i32, %c0_i32_0 : i32, i32
  }
  func.func @transform_6(%arg0: i32) -> (i32, i32, i32, i32) {
    %c0_i32 = arith.constant 0 : i32
    %c0_i32_0 = arith.constant 0 : i32
    %c0_i32_1 = arith.constant 0 : i32
    %c0_i32_2 = arith.constant 0 : i32
    return %arg0, %c0_i32, %c0_i32_0, %c0_i32_1 : i32, i32, i32, i32
  }
}

</mosaic_0001>

<llo_original>
// kernel: tpu_custom_call.1
$region0: #{tpu_custom_call.1}
  #allocation0 [shape = 'u32[]', space=smem, size = 0x4, offset = 0x4, fixed_abs, tag = 'smem constant byte address 0x4 - core index']
  #allocation1 [shape = 'u32[72,128]{1,0:T(1,128)}', space=vmem, size = 0x9000, scoped, tag = 'internal scratch']
  %s0 = inlined_call_operand.vmem [shape: f32[128,32], index: 0, kind: input, shape index: {}]
  %s1 = inlined_call_operand.vmem [shape: f32[32,68], index: 1, kind: input, shape index: {}]
  %s2 = inlined_call_operand.vmem [shape: f32[64,4], index: 2, kind: input, shape index: {}]
  %s3 = inlined_call_operand.vmem [shape: s32[1,64], index: 3, kind: input, shape index: {}]
  %s4 = inlined_call_operand.vmem [shape: f32[1,64], index: 4, kind: input, shape index: {}]
  %s5 = inlined_call_operand.vmem [shape: f32[1,64], index: 5, kind: input, shape index: {}]
  %s6 = inlined_call_operand.hbm [shape: f32[16,2,8,32], index: 6, kind: output, shape index: {}]
  %s7 = sld [smem:[#allocation0]]
  $region57: #{tpu_custom_call.1} parent=0
    _
  %s9 = ssub.s32 1, %s7
  %s10 = scalar_select 0, %s9, %s7
  $region1: #{tpu_custom_call.1} parent=0
    #allocation2 [shape = 'u8[131072]{0}', space=vmem, size = 0x20000, scoped, tag = 'output window, operand 0']
    #allocation3 [shape = 's32[2]{0}', space=sflag, size = 0x8, scoped, tag = 'scoped memory for tpu_custom_call.1']
    %11 = vsyncpa [#allocation3], 0
    %s12 = scalar_lea.sflag [#allocation3], 1
    %13 = vsyncpa %s12, 0
    loop: start=0, step=1, limit=4
    $region2: #{tpu_custom_call.1} parent=1 // loop_pre_header
      _
    $region3: #{tpu_custom_call.1} parent=1 // loop_header
      %s15 = sphi 0, %s19
      %p16 = scmp.ge.s32.totalorder %s15, 4
      %s25 = sphi 0, %s27
      %s28 = sphi 0, %s25
      %s29 = sphi 0, %s28
      %s45 = sphi 0, %s29
      %s49 = sphi 0, %s49
      %s51 = sphi 0, %s49
      %s52 = sphi 0, %s51
      %s66 = sphi 0, %s52
      %s70 = sphi 0, %s70
      %s72 = sphi 0, %s70
      %s73 = sphi 0, %s72
      %s87 = sphi 0, %s73
      %s91 = sphi 0, %s91
      %s93 = sphi 0, %s91
      %s94 = sphi 0, %s93
      %s108 = sphi 0, %s94
      %s112 = sphi 0, %s112
      %s114 = sphi 0, %s112
      %s115 = sphi 0, %s114
      %s129 = sphi 0, %s115
      %s133 = sphi 0, %s133
      %s135 = sphi 0, %s133
      %s136 = sphi 0, %s135
      %s150 = sphi 0, %s136
      %s156 = sphi 0, %s158
      %s159 = sphi 0, %s156
      %s160 = sphi 0, %s159
      %s176 = sphi 0, %s160
    $region4: #{tpu_custom_call.1} parent=1 // loop_header_branch
      %18 = sbr.rel (%p16) target = $region8
    $region5: #{tpu_custom_call.1} parent=1 // loop_body
      %s20 = ssub.s32 %s15, 1
      %s21 = ssub.s32 %s15, 2
      %s22 = sadd.s32 %s15, 1
      %s23 = ssub.s32 %s15, %s22
      %p24 = scmp.eq.s32.totalorder %s23, 0
      %s26 = sadd.s32 %s25, 1
      %s27 = scalar_select %p24, %s25, %s26
      %p30 = pneg %p24
      %p31 = scmp.eq.s32.totalorder %s15, 1
      %p32 = por %p30, %p31
      %p33 = scmp.ne.s32.totalorder %s25, %s28
      %p34 = scmp.eq.s32.totalorder %s15, 0
      %p35 = por %p33, %p34
      %p36 = scmp.ne.s32.totalorder %s25, %s28
      %p37 = scmp.eq.s32.totalorder %s20, 1
      %p38 = por %p36, %p37
      %p39 = scmp.ne.s32.totalorder %s28, %s29
      %p40 = scmp.eq.s32.totalorder %s20, 0
      %p41 = por %p39, %p40
      %p42 = scmp.ne.s32.totalorder %s28, %s29
      %p43 = scmp.eq.s32.totalorder %s21, 1
      %p44 = por %p42, %p43
      %p46 = scmp.ne.s32.totalorder %s29, %s45
      %p47 = scmp.eq.s32.totalorder %s21, 0
      %p48 = por %p46, %p47
      %s50 = sadd.s32 %s49, 1
      %p53 = scmp.eq.s32.totalorder %s15, 1
      %p54 = scmp.ne.s32.totalorder %s49, %s51
      %p55 = scmp.eq.s32.totalorder %s15, 0
      %p56 = por %p54, %p55
      %p57 = scmp.ne.s32.totalorder %s49, %s51
      %p58 = scmp.eq.s32.totalorder %s20, 1
      %p59 = por %p57, %p58
      %p60 = scmp.ne.s32.totalorder %s51, %s52
      %p61 = scmp.eq.s32.totalorder %s20, 0
      %p62 = por %p60, %p61
      %p63 = scmp.ne.s32.totalorder %s51, %s52
      %p64 = scmp.eq.s32.totalorder %s21, 1
      %p65 = por %p63, %p64
      %p67 = scmp.ne.s32.totalorder %s52, %s66
      %p68 = scmp.eq.s32.totalorder %s21, 0
      %p69 = por %p67, %p68
      %s71 = sadd.s32 %s70, 1
      %p74 = scmp.eq.s32.totalorder %s15, 1
      %p75 = scmp.ne.s32.totalorder %s70, %s72
      %p76 = scmp.eq.s32.totalorder %s15, 0
      %p77 = por %p75, %p76
      %p78 = scmp.ne.s32.totalorder %s70, %s72
      %p79 = scmp.eq.s32.totalorder %s20, 1
      %p80 = por %p78, %p79
      %p81 = scmp.ne.s32.totalorder %s72, %s73
      %p82 = scmp.eq.s32.totalorder %s20, 0
      %p83 = por %p81, %p82
      %p84 = scmp.ne.s32.totalorder %s72, %s73
      %p85 = scmp.eq.s32.totalorder %s21, 1
      %p86 = por %p84, %p85
      %p88 = scmp.ne.s32.totalorder %s73, %s87
      %p89 = scmp.eq.s32.totalorder %s21, 0
      %p90 = por %p88, %p89
      %s92 = sadd.s32 %s91, 1
      %p95 = scmp.eq.s32.totalorder %s15, 1
      %p96 = scmp.ne.s32.totalorder %s91, %s93
      %p97 = scmp.eq.s32.totalorder %s15, 0
      %p98 = por %p96, %p97
      %p99 = scmp.ne.s32.totalorder %s91, %s93
      %p100 = scmp.eq.s32.totalorder %s20, 1
      %p101 = por %p99, %p100
      %p102 = scmp.ne.s32.totalorder %s93, %s94
      %p103 = scmp.eq.s32.totalorder %s20, 0
      %p104 = por %p102, %p103
      %p105 = scmp.ne.s32.totalorder %s93, %s94
      %p106 = scmp.eq.s32.totalorder %s21, 1
      %p107 = por %p105, %p106
      %p109 = scmp.ne.s32.totalorder %s94, %s108
      %p110 = scmp.eq.s32.totalorder %s21, 0
      %p111 = por %p109, %p110
      %s113 = sadd.s32 %s112, 1
      %p116 = scmp.eq.s32.totalorder %s15, 1
      %p117 = scmp.ne.s32.totalorder %s112, %s114
      %p118 = scmp.eq.s32.totalorder %s15, 0
      %p119 = por %p117, %p118
      %p120 = scmp.ne.s32.totalorder %s112, %s114
      %p121 = scmp.eq.s32.totalorder %s20, 1
      %p122 = por %p120, %p121
      %p123 = scmp.ne.s32.totalorder %s114, %s115
      %p124 = scmp.eq.s32.totalorder %s20, 0
      %p125 = por %p123, %p124
      %p126 = scmp.ne.s32.totalorder %s114, %s115
      %p127 = scmp.eq.s32.totalorder %s21, 1
      %p128 = por %p126, %p127
      %p130 = scmp.ne.s32.totalorder %s115, %s129
      %p131 = scmp.eq.s32.totalorder %s21, 0
      %p132 = por %p130, %p131
      %s134 = sadd.s32 %s133, 1
      %p137 = scmp.eq.s32.totalorder %s15, 1
      %p138 = scmp.ne.s32.totalorder %s133, %s135
      %p139 = scmp.eq.s32.totalorder %s15, 0
      %p140 = por %p138, %p139
      %p141 = scmp.ne.s32.totalorder %s133, %s135
      %p142 = scmp.eq.s32.totalorder %s20, 1
      %p143 = por %p141, %p142
      %p144 = scmp.ne.s32.totalorder %s135, %s136
      %p145 = scmp.eq.s32.totalorder %s20, 0
      %p146 = por %p144, %p145
      %p147 = scmp.ne.s32.totalorder %s135, %s136
      %p148 = scmp.eq.s32.totalorder %s21, 1
      %p149 = por %p147, %p148
      %p151 = scmp.ne.s32.totalorder %s136, %s150
      %p152 = scmp.eq.s32.totalorder %s21, 0
      %p153 = por %p151, %p152
      %s154 = ssub.s32 %s15, %s22
      %p155 = scmp.eq.s32.totalorder %s154, 0
      %s157 = sadd.s32 %s156, 1
      %s158 = scalar_select %p155, %s156, %s157
      %p161 = pneg %p155
      %p162 = scmp.eq.s32.totalorder %s15, 1
      %p163 = por %p161, %p162
      %p164 = scmp.ne.s32.totalorder %s156, %s159
      %p165 = scmp.eq.s32.totalorder %s15, 0
      %p166 = por %p164, %p165
      %p167 = scmp.ne.s32.totalorder %s156, %s159
      %p168 = scmp.eq.s32.totalorder %s20, 1
      %p169 = por %p167, %p168
      %p170 = scmp.ne.s32.totalorder %s159, %s160
      %p171 = scmp.eq.s32.totalorder %s20, 0
      %p172 = por %p170, %p171
      %p173 = scmp.ne.s32.totalorder %s159, %s160
      %p174 = scmp.eq.s32.totalorder %s21, 1
      %p175 = por %p173, %p174
      %p177 = scmp.ne.s32.totalorder %s160, %s176
      %p178 = scmp.eq.s32.totalorder %s21, 0
      %p179 = por %p177, %p178
      %p180 = scmp.le.s32.totalorder 1, %s15
      %p181 = scmp.lt.s32.totalorder %s15, 3
      %p182 = pnand %p180, %p181
      %p183 = pneg %p182
      // Predicated region
      $region9: #{tpu_custom_call.1} parent=5 // pred_check
        _
      $region10: #{tpu_custom_call.1} parent=5 // pred_check_branch
        %185 = sbr.rel (%p182) target = $region12
      $region11: #{tpu_custom_call.1} parent=5 // pred_region
        %s186 = ssub.s32 %s15, 1
        // Predicated region
        $region13: #{tpu_custom_call.1} parent=11 // pred_check
          %p187 = pneg %p62
        $region14: #{tpu_custom_call.1} parent=11 // pred_check_branch
          %189 = sbr.rel (%p187) target = $region16
        $region15: #{tpu_custom_call.1} parent=11 // pred_region
          _
        $region16: #{tpu_custom_call.1} parent=11 // pred_fallthru
          _
        // Predicated region
        $region17: #{tpu_custom_call.1} parent=11 // pred_check
          %p190 = pneg %p83
        $region18: #{tpu_custom_call.1} parent=11 // pred_check_branch
          %192 = sbr.rel (%p190) target = $region20
        $region19: #{tpu_custom_call.1} parent=11 // pred_region
          _
        $region20: #{tpu_custom_call.1} parent=11 // pred_fallthru
          _
        // Predicated region
        $region21: #{tpu_custom_call.1} parent=11 // pred_check
          %p193 = pneg %p104
        $region22: #{tpu_custom_call.1} parent=11 // pred_check_branch
          %195 = sbr.rel (%p193) target = $region24
        $region23: #{tpu_custom_call.1} parent=11 // pred_region
          _
        $region24: #{tpu_custom_call.1} parent=11 // pred_fallthru
          _
        // Predicated region
        $region25: #{tpu_custom_call.1} parent=11 // pred_check
          %p196 = pneg %p125
        $region26: #{tpu_custom_call.1} parent=11 // pred_check_branch
          %198 = sbr.rel (%p196) target = $region28
        $region27: #{tpu_custom_call.1} parent=11 // pred_region
          _
        $region28: #{tpu_custom_call.1} parent=11 // pred_fallthru
          _
        // Predicated region
        $region29: #{tpu_custom_call.1} parent=11 // pred_check
          %p199 = pneg %p146
        $region30: #{tpu_custom_call.1} parent=11 // pred_check_branch
          %201 = sbr.rel (%p199) target = $region32
        $region31: #{tpu_custom_call.1} parent=11 // pred_region
          _
        $region32: #{tpu_custom_call.1} parent=11 // pred_fallthru
          _
      $region12: #{tpu_custom_call.1} parent=5 // pred_fallthru
        _
      %p202 = scmp.lt.s32.totalorder %s15, 2
      // Predicated region
      $region33: #{tpu_custom_call.1} parent=5 // pred_check
        %p203 = pneg %p202
      $region34: #{tpu_custom_call.1} parent=5 // pred_check_branch
        %205 = sbr.rel (%p203) target = $region36
      $region35: #{tpu_custom_call.1} parent=5 // pred_region
        // Predicated region
        $region37: #{tpu_custom_call.1} parent=35 // pred_check
          %p206 = pneg %p35
        $region38: #{tpu_custom_call.1} parent=35 // pred_check_branch
          %208 = sbr.rel (%p206) target = $region40
        $region39: #{tpu_custom_call.1} parent=35 // pred_region
          %s209 = smul.u32 8, %s15
          %p210 = scmp.lt.s32.totalorder %s209, 15
          %s211 = scalar_select %p210, %s209, 15
          %s212 = smul.addr %s211, 8
          %s213 = scalar_lea.vmem %s0, %s212
          %s214 = smul.u32 8, %s15
        $region40: #{tpu_custom_call.1} parent=35 // pred_fallthru
          _
      $region36: #{tpu_custom_call.1} parent=5 // pred_fallthru
        _
      %p215 = scmp.le.s32.totalorder 1, %s15
      %p216 = scmp.lt.s32.totalorder %s15, 3
      %p217 = pnand %p215, %p216
      %p218 = pneg %p217
      // Predicated region
      $region41: #{tpu_custom_call.1} parent=5 // pred_check
        _
      $region42: #{tpu_custom_call.1} parent=5 // pred_check_branch
        %220 = sbr.rel (%p217) target = $region44
      $region43: #{tpu_custom_call.1} parent=5 // pred_region
        %s221 = ssub.s32 %s15, 1
        %s222 = smul.u32 8, %s20
        %p223 = scmp.lt.s32.totalorder %s222, 15
        %s224 = scalar_select %p223, %s222, 15
        %s225 = smul.addr %s224, 8
        %s226 = scalar_lea.vmem %s0, %s225
        %p227 = pneg %p41
        %p228 = pneg %p38
        %p229 = pneg %p62
        %p230 = pneg %p59
        %p231 = pneg %p83
        %p232 = pneg %p80
        %p233 = pneg %p104
        %p234 = pneg %p101
        %p235 = pneg %p125
        %p236 = pneg %p122
        %p237 = pneg %p146
        %p238 = pneg %p143
        %p239 = pneg %p172
        %p240 = pneg %p169
        %s241 = sand.u32 %s159, 1
        %s242 = scalar_lea.sflag [#allocation3], %s241
        %s243 = sand.u32 %s159, 1
        %s244 = smul.addr %s243, 128
        %s245 = scalar_lea.vmem [#allocation2], %s244
        %s246 = smul.u32 8, %s20
        %p247 = scmp.lt.s32.totalorder %s246, 15
        %s248 = scalar_select %p247, %s246, 15
        %s249 = smul.addr %s248, 8
        %s250 = scalar_lea.vmem %s0, %s249
        %s251 = smul.u32 8, %s20
        %s252 = smul.u32 8, %s20
        %v253 = vld [vmem:[%s250] sm:$0xff]
        %v254 = vld [vmem:[%s250 + $0x8] sm:$0xff]
        %v255 = vld [vmem:[%s250 + $0x10] sm:$0xff]
        %v256 = vld [vmem:[%s250 + $0x18] sm:$0xff]
        %v257 = vld [vmem:[%s250 + $0x20] sm:$0xff]
        %v258 = vld [vmem:[%s250 + $0x28] sm:$0xff]
        %v259 = vld [vmem:[%s250 + $0x30] sm:$0xff]
        %v260 = vld [vmem:[%s250 + $0x38] sm:$0xff]
        %v261 = vld [vmem:[%s1] sm:$0xff]
        %v262 = vld [vmem:[%s1 + $0x8] sm:$0xff]
        %v263 = vld [vmem:[%s1 + $0x10] sm:$0xff]
        %v264 = vld [vmem:[%s1 + $0x18] sm:$0xff]
        %vm265 = vcmask 261120
        %v267 = vsel %vm265, %v253, 0
        %v270 = vsel %vm265, %v254, 0
        %v273 = vsel %vm265, %v255, 0
        %v276 = vsel %vm265, %v256, 0
        %v279 = vsel %vm265, %v257, 0
        %v282 = vsel %vm265, %v258, 0
        %v285 = vsel %vm265, %v259, 0
        %v288 = vsel %vm265, %v260, 0
        %290 = vmatpush.msra.mxu0 0.0
        %291 = vmatpush.msra.mxu0 0.0
        %292 = vmatpush.msra.mxu0 0.0
        %293 = vmatpush.msra.mxu0 0.0
        %294 = vmatpush.msra.mxu0 0.0
        %295 = vmatpush.msra.mxu0 0.0
        %296 = vmatpush.msra.mxu0 0.0
        %297 = vmatpush.msra.mxu0 0.0
        %298 = vmatpush.msra.mxu0 0.0
        %299 = vmatpush.msra.mxu0 0.0
        %300 = vmatpush.msra.mxu0 0.0
        %301 = vmatpush.msra.mxu0 0.0
        %302 = vmatpush.msra.mxu0 %v264
        %303 = vmatpush.msra.mxu0 %v263
        %304 = vmatpush.msra.mxu0 %v262
        %305 = vmatpush.msra.mxu0 %v261
        %306 = vmatmul.f32.gmra.mxu0 %v267
        %v307 = vpop.f32.mrf.mxu0
        %v308 = vadd.f32 0.0, %v307
        %309 = vmatmul.f32.gmra.mxu0 %v270
        %v310 = vpop.f32.mrf.mxu0
        %v311 = vadd.f32 0.0, %v310
        %312 = vmatmul.f32.gmra.mxu0 %v273
        %v313 = vpop.f32.mrf.mxu0
        %v314 = vadd.f32 0.0, %v313
        %315 = vmatmul.f32.gmra.mxu0 %v276
        %v316 = vpop.f32.mrf.mxu0
        %v317 = vadd.f32 0.0, %v316
        %318 = vmatmul.f32.gmra.mxu0 %v279
        %v319 = vpop.f32.mrf.mxu0
        %v320 = vadd.f32 0.0, %v319
        %321 = vmatmul.f32.gmra.mxu0 %v282
        %v322 = vpop.f32.mrf.mxu0
        %v323 = vadd.f32 0.0, %v322
        %324 = vmatmul.f32.gmra.mxu0 %v285
        %v325 = vpop.f32.mrf.mxu0
        %v326 = vadd.f32 0.0, %v325
        %327 = vmatmul.f32.gmra.mxu0 %v288
        %v328 = vpop.f32.mrf.mxu0
        %v329 = vadd.f32 0.0, %v328
        %330 = vdwg.mxu0
        %v331 = vmul.f32 %v308, %v308
        %v332 = vmul.f32 %v311, %v311
        %v333 = vmul.f32 %v314, %v314
        %v334 = vmul.f32 %v317, %v317
        %v335 = vmul.f32 %v320, %v320
        %v336 = vmul.f32 %v323, %v323
        %v337 = vmul.f32 %v326, %v326
        %v338 = vmul.f32 %v329, %v329
        %v339 = vld [vmem:[%s2] sm:$0xff]
        %v340 = vld [vmem:[%s2 + $0x8] sm:$0xff]
        %v341 = vld [vmem:[%s2 + $0x10] sm:$0xff]
        %v342 = vld [vmem:[%s2 + $0x18] sm:$0xff]
        %v343 = vld [vmem:[%s2 + $0x20] sm:$0xff]
        %v344 = vld [vmem:[%s2 + $0x28] sm:$0xff]
        %v345 = vld [vmem:[%s2 + $0x30] sm:$0xff]
        %v346 = vld [vmem:[%s2 + $0x38] sm:$0xff]
        %vm347 = vcmask 523264
        %v349 = vsel %vm347, %v331, 0
        %v352 = vsel %vm347, %v332, 0
        %v355 = vsel %vm347, %v333, 0
        %v358 = vsel %vm347, %v334, 0
        %v361 = vsel %vm347, %v335, 0
        %v364 = vsel %vm347, %v336, 0
        %v367 = vsel %vm347, %v337, 0
        %v370 = vsel %vm347, %v338, 0
        %372 = vmatpush.msra.mxu0 0.0
        %373 = vmatpush.msra.mxu0 0.0
        %374 = vmatpush.msra.mxu0 0.0
        %375 = vmatpush.msra.mxu0 0.0
        %376 = vmatpush.msra.mxu0 0.0
        %377 = vmatpush.msra.mxu0 0.0
        %378 = vmatpush.msra.mxu0 0.0
        %379 = vmatpush.msra.mxu0 0.0
        %380 = vmatpush.msra.mxu0 %v346
        %381 = vmatpush.msra.mxu0 %v345
        %382 = vmatpush.msra.mxu0 %v344
        %383 = vmatpush.msra.mxu0 %v343
        %384 = vmatpush.msra.mxu0 %v342
        %385 = vmatpush.msra.mxu0 %v341
        %386 = vmatpush.msra.mxu0 %v340
        %387 = vmatpush.msra.mxu0 %v339
        %388 = vmatmul.f32.gmra.mxu0 %v349
        %v389 = vpop.f32.mrf.mxu0
        %v390 = vadd.f32 0.0, %v389
        %391 = vmatmul.f32.gmra.mxu0 %v352
        %v392 = vpop.f32.mrf.mxu0
        %v393 = vadd.f32 0.0, %v392
        %394 = vmatmul.f32.gmra.mxu0 %v355
        %v395 = vpop.f32.mrf.mxu0
        %v396 = vadd.f32 0.0, %v395
        %397 = vmatmul.f32.gmra.mxu0 %v358
        %v398 = vpop.f32.mrf.mxu0
        %v399 = vadd.f32 0.0, %v398
        %400 = vmatmul.f32.gmra.mxu0 %v361
        %v401 = vpop.f32.mrf.mxu0
        %v402 = vadd.f32 0.0, %v401
        %403 = vmatmul.f32.gmra.mxu0 %v364
        %v404 = vpop.f32.mrf.mxu0
        %v405 = vadd.f32 0.0, %v404
        %406 = vmatmul.f32.gmra.mxu0 %v367
        %v407 = vpop.f32.mrf.mxu0
        %v408 = vadd.f32 0.0, %v407
        %409 = vmatmul.f32.gmra.mxu0 %v370
        %v410 = vpop.f32.mrf.mxu0
        %v411 = vadd.f32 0.0, %v410
        %412 = vdwg.mxu0
        %v413 = vmul.f32 %v390, 0.0625
        %v414 = vmul.f32 %v393, 0.0625
        %v415 = vmul.f32 %v396, 0.0625
        %v416 = vmul.f32 %v399, 0.0625
        %v417 = vmul.f32 %v402, 0.0625
        %v418 = vmul.f32 %v405, 0.0625
        %v419 = vmul.f32 %v408, 0.0625
        %v420 = vmul.f32 %v411, 0.0625
        %421 = vrot.lane.b32.xlu0 %v331, 64
        %v422 = vpop.permute.xlu0 %421
        %423 = vrot.lane.b32.xlu0 %v332, 64
        %v424 = vpop.permute.xlu0 %423
        %425 = vrot.lane.b32.xlu0 %v333, 64
        %v426 = vpop.permute.xlu0 %425
        %427 = vrot.lane.b32.xlu0 %v334, 64
        %v428 = vpop.permute.xlu0 %427
        %429 = vrot.lane.b32.xlu0 %v335, 64
        %v430 = vpop.permute.xlu0 %429
        %431 = vrot.lane.b32.xlu0 %v336, 64
        %v432 = vpop.permute.xlu0 %431
        %433 = vrot.lane.b32.xlu0 %v337, 64
        %v434 = vpop.permute.xlu0 %433
        %435 = vrot.lane.b32.xlu0 %v338, 64
        %v436 = vpop.permute.xlu0 %435
        %v445 = vsub.f32 %v413, %v422
        %v446 = vsub.f32 %v414, %v424
        %v447 = vsub.f32 %v415, %v426
        %v448 = vsub.f32 %v416, %v428
        %v449 = vsub.f32 %v417, %v430
        %v450 = vsub.f32 %v418, %v432
        %v451 = vsub.f32 %v419, %v434
        %v452 = vsub.f32 %v420, %v436
        %v453 = vmax.f32 %v445, 0.0
        %v454 = vmax.f32 %v446, 0.0
        %v455 = vmax.f32 %v447, 0.0
        %v456 = vmax.f32 %v448, 0.0
        %v457 = vmax.f32 %v449, 0.0
        %v458 = vmax.f32 %v450, 0.0
        %v459 = vmax.f32 %v451, 0.0
        %v460 = vmax.f32 %v452, 0.0
        %v461 = vadd.f32 %v453, 1e-05
        %v462 = vadd.f32 %v454, 1e-05
        %v463 = vadd.f32 %v455, 1e-05
        %v464 = vadd.f32 %v456, 1e-05
        %v465 = vadd.f32 %v457, 1e-05
        %v466 = vadd.f32 %v458, 1e-05
        %v467 = vadd.f32 %v459, 1e-05
        %v468 = vadd.f32 %v460, 1e-05
        %v469 = vrsqrt.pop %v461
        %v470 = vmul.f32 %v469, %v461
        %v471 = vmul.f32 %v470, %v469
        %v472 = vmul.f32 0.5, %v471
        %v473 = vsub.f32 1.5, %v472
        %v474 = vmul.f32 %v469, %v473
        %vm475 = vweird.f32 %v461
        %vm476 = vweird.f32 %v469
        %vm477 = vmor %vm475, %vm476
        %v478 = vsel %vm477, %v469, %v474
        %v479 = vrsqrt.pop %v462
        %v480 = vmul.f32 %v479, %v462
        %v481 = vmul.f32 %v480, %v479
        %v482 = vmul.f32 0.5, %v481
        %v483 = vsub.f32 1.5, %v482
        %v484 = vmul.f32 %v479, %v483
        %vm485 = vweird.f32 %v462
        %vm486 = vweird.f32 %v479
        %vm487 = vmor %vm485, %vm486
        %v488 = vsel %vm487, %v479, %v484
        %v489 = vrsqrt.pop %v463
        %v490 = vmul.f32 %v489, %v463
        %v491 = vmul.f32 %v490, %v489
        %v492 = vmul.f32 0.5, %v491
        %v493 = vsub.f32 1.5, %v492
        %v494 = vmul.f32 %v489, %v493
        %vm495 = vweird.f32 %v463
        %vm496 = vweird.f32 %v489
        %vm497 = vmor %vm495, %vm496
        %v498 = vsel %vm497, %v489, %v494
        %v499 = vrsqrt.pop %v464
        %v500 = vmul.f32 %v499, %v464
        %v501 = vmul.f32 %v500, %v499
        %v502 = vmul.f32 0.5, %v501
        %v503 = vsub.f32 1.5, %v502
        %v504 = vmul.f32 %v499, %v503
        %vm505 = vweird.f32 %v464
        %vm506 = vweird.f32 %v499
        %vm507 = vmor %vm505, %vm506
        %v508 = vsel %vm507, %v499, %v504
        %v509 = vrsqrt.pop %v465
        %v510 = vmul.f32 %v509, %v465
        %v511 = vmul.f32 %v510, %v509
        %v512 = vmul.f32 0.5, %v511
        %v513 = vsub.f32 1.5, %v512
        %v514 = vmul.f32 %v509, %v513
        %vm515 = vweird.f32 %v465
        %vm516 = vweird.f32 %v509
        %vm517 = vmor %vm515, %vm516
        %v518 = vsel %vm517, %v509, %v514
        %v519 = vrsqrt.pop %v466
        %v520 = vmul.f32 %v519, %v466
        %v521 = vmul.f32 %v520, %v519
        %v522 = vmul.f32 0.5, %v521
        %v523 = vsub.f32 1.5, %v522
        %v524 = vmul.f32 %v519, %v523
        %vm525 = vweird.f32 %v466
        %vm526 = vweird.f32 %v519
        %vm527 = vmor %vm525, %vm526
        %v528 = vsel %vm527, %v519, %v524
        %v529 = vrsqrt.pop %v467
        %v530 = vmul.f32 %v529, %v467
        %v531 = vmul.f32 %v530, %v529
        %v532 = vmul.f32 0.5, %v531
        %v533 = vsub.f32 1.5, %v532
        %v534 = vmul.f32 %v529, %v533
        %vm535 = vweird.f32 %v467
        %vm536 = vweird.f32 %v529
        %vm537 = vmor %vm535, %vm536
        %v538 = vsel %vm537, %v529, %v534
        %v539 = vrsqrt.pop %v468
        %v540 = vmul.f32 %v539, %v468
        %v541 = vmul.f32 %v540, %v539
        %v542 = vmul.f32 0.5, %v541
        %v543 = vsub.f32 1.5, %v542
        %v544 = vmul.f32 %v539, %v543
        %vm545 = vweird.f32 %v468
        %vm546 = vweird.f32 %v539
        %vm547 = vmor %vm545, %vm546
        %v548 = vsel %vm547, %v539, %v544
        %v549 = vld [vmem:[%s3] sm:$0x1]
        %v550 = vperm.slane %v549, 0
        %vm551 = vcmp.eq.s32.totalorder %v550, 0
        %vm552 = vcmp.eq.s32.totalorder %v550, 1
        %vm553 = vcmp.eq.s32.totalorder %v550, 2
        %555 = vset.pattern.permute.xlu0 66
        %556 = vperm.xlu0 %555, %v308
        %v557 = vpop.permute.xlu0 %556
        %560 = vset.pattern.permute.xlu0 66
        %561 = vperm.xlu0 %560, %v311
        %v562 = vpop.permute.xlu0 %561
        %565 = vset.pattern.permute.xlu0 66
        %566 = vperm.xlu0 %565, %v314
        %v567 = vpop.permute.xlu0 %566
        %570 = vset.pattern.permute.xlu0 66
        %571 = vperm.xlu0 %570, %v317
        %v572 = vpop.permute.xlu0 %571
        %575 = vset.pattern.permute.xlu0 66
        %576 = vperm.xlu0 %575, %v320
        %v577 = vpop.permute.xlu0 %576
        %580 = vset.pattern.permute.xlu0 66
        %581 = vperm.xlu0 %580, %v323
        %v582 = vpop.permute.xlu0 %581
        %585 = vset.pattern.permute.xlu0 66
        %586 = vperm.xlu0 %585, %v326
        %v587 = vpop.permute.xlu0 %586
        %590 = vset.pattern.permute.xlu0 66
        %591 = vperm.xlu0 %590, %v329
        %v592 = vpop.permute.xlu0 %591
        %594 = vset.pattern.permute.xlu0 67
        %595 = vperm.xlu0 %594, %v308
        %v596 = vpop.permute.xlu0 %595
        %598 = vset.pattern.permute.xlu0 67
        %599 = vperm.xlu0 %598, %v311
        %v600 = vpop.permute.xlu0 %599
        %602 = vset.pattern.permute.xlu0 67
        %603 = vperm.xlu0 %602, %v314
        %v604 = vpop.permute.xlu0 %603
        %606 = vset.pattern.permute.xlu0 67
        %607 = vperm.xlu0 %606, %v317
        %v608 = vpop.permute.xlu0 %607
        %610 = vset.pattern.permute.xlu0 67
        %611 = vperm.xlu0 %610, %v320
        %v612 = vpop.permute.xlu0 %611
        %614 = vset.pattern.permute.xlu0 67
        %615 = vperm.xlu0 %614, %v323
        %v616 = vpop.permute.xlu0 %615
        %618 = vset.pattern.permute.xlu0 67
        %619 = vperm.xlu0 %618, %v326
        %v620 = vpop.permute.xlu0 %619
        %622 = vset.pattern.permute.xlu0 67
        %623 = vperm.xlu0 %622, %v329
        %v624 = vpop.permute.xlu0 %623
        %v626 = vsel %vm553, %v557, %v596
        %v627 = vsel %vm553, %v562, %v600
        %v628 = vsel %vm553, %v567, %v604
        %v629 = vsel %vm553, %v572, %v608
        %v630 = vsel %vm553, %v577, %v612
        %v631 = vsel %vm553, %v582, %v616
        %v632 = vsel %vm553, %v587, %v620
        %v633 = vsel %vm553, %v592, %v624
        %634 = vset.pattern.permute.xlu0 65
        %635 = vperm.xlu0 %634, %v308
        %v636 = vpop.permute.xlu0 %635
        %638 = vset.pattern.permute.xlu0 65
        %639 = vperm.xlu0 %638, %v311
        %v640 = vpop.permute.xlu0 %639
        %642 = vset.pattern.permute.xlu0 65
        %643 = vperm.xlu0 %642, %v314
        %v644 = vpop.permute.xlu0 %643
        %646 = vset.pattern.permute.xlu0 65
        %647 = vperm.xlu0 %646, %v317
        %v648 = vpop.permute.xlu0 %647
        %650 = vset.pattern.permute.xlu0 65
        %651 = vperm.xlu0 %650, %v320
        %v652 = vpop.permute.xlu0 %651
        %654 = vset.pattern.permute.xlu0 65
        %655 = vperm.xlu0 %654, %v323
        %v656 = vpop.permute.xlu0 %655
        %658 = vset.pattern.permute.xlu0 65
        %659 = vperm.xlu0 %658, %v326
        %v660 = vpop.permute.xlu0 %659
        %662 = vset.pattern.permute.xlu0 65
        %663 = vperm.xlu0 %662, %v329
        %v664 = vpop.permute.xlu0 %663
        %v666 = vsel %vm552, %v636, %v626
        %v667 = vsel %vm552, %v640, %v627
        %v668 = vsel %vm552, %v644, %v628
        %v669 = vsel %vm552, %v648, %v629
        %v670 = vsel %vm552, %v652, %v630
        %v671 = vsel %vm552, %v656, %v631
        %v672 = vsel %vm552, %v660, %v632
        %v673 = vsel %vm552, %v664, %v633
        %674 = vset.pattern.permute.xlu0 64
        %675 = vperm.xlu0 %674, %v308
        %v676 = vpop.permute.xlu0 %675
        %678 = vset.pattern.permute.xlu0 64
        %679 = vperm.xlu0 %678, %v311
        %v680 = vpop.permute.xlu0 %679
        %682 = vset.pattern.permute.xlu0 64
        %683 = vperm.xlu0 %682, %v314
        %v684 = vpop.permute.xlu0 %683
        %686 = vset.pattern.permute.xlu0 64
        %687 = vperm.xlu0 %686, %v317
        %v688 = vpop.permute.xlu0 %687
        %690 = vset.pattern.permute.xlu0 64
        %691 = vperm.xlu0 %690, %v320
        %v692 = vpop.permute.xlu0 %691
        %694 = vset.pattern.permute.xlu0 64
        %695 = vperm.xlu0 %694, %v323
        %v696 = vpop.permute.xlu0 %695
        %698 = vset.pattern.permute.xlu0 64
        %699 = vperm.xlu0 %698, %v326
        %v700 = vpop.permute.xlu0 %699
        %702 = vset.pattern.permute.xlu0 64
        %703 = vperm.xlu0 %702, %v329
        %v704 = vpop.permute.xlu0 %703
        %v706 = vsel %vm551, %v676, %v666
        %v707 = vsel %vm551, %v680, %v667
        %v708 = vsel %vm551, %v684, %v668
        %v709 = vsel %vm551, %v688, %v669
        %v710 = vsel %vm551, %v692, %v670
        %v711 = vsel %vm551, %v696, %v671
        %v712 = vsel %vm551, %v700, %v672
        %v713 = vsel %vm551, %v704, %v673
        %715 = vset.pattern.permute.xlu0 2
        %716 = vperm.xlu0 %715, %v478
        %v717 = vpop.permute.xlu0 %716
        %720 = vset.pattern.permute.xlu0 2
        %721 = vperm.xlu0 %720, %v488
        %v722 = vpop.permute.xlu0 %721
        %725 = vset.pattern.permute.xlu0 2
        %726 = vperm.xlu0 %725, %v498
        %v727 = vpop.permute.xlu0 %726
        %730 = vset.pattern.permute.xlu0 2
        %731 = vperm.xlu0 %730, %v508
        %v732 = vpop.permute.xlu0 %731
        %735 = vset.pattern.permute.xlu0 2
        %736 = vperm.xlu0 %735, %v518
        %v737 = vpop.permute.xlu0 %736
        %740 = vset.pattern.permute.xlu0 2
        %741 = vperm.xlu0 %740, %v528
        %v742 = vpop.permute.xlu0 %741
        %745 = vset.pattern.permute.xlu0 2
        %746 = vperm.xlu0 %745, %v538
        %v747 = vpop.permute.xlu0 %746
        %750 = vset.pattern.permute.xlu0 2
        %751 = vperm.xlu0 %750, %v548
        %v752 = vpop.permute.xlu0 %751
        %754 = vset.pattern.permute.xlu0 3
        %755 = vperm.xlu0 %754, %v478
        %v756 = vpop.permute.xlu0 %755
        %758 = vset.pattern.permute.xlu0 3
        %759 = vperm.xlu0 %758, %v488
        %v760 = vpop.permute.xlu0 %759
        %762 = vset.pattern.permute.xlu0 3
        %763 = vperm.xlu0 %762, %v498
        %v764 = vpop.permute.xlu0 %763
        %766 = vset.pattern.permute.xlu0 3
        %767 = vperm.xlu0 %766, %v508
        %v768 = vpop.permute.xlu0 %767
        %770 = vset.pattern.permute.xlu0 3
        %771 = vperm.xlu0 %770, %v518
        %v772 = vpop.permute.xlu0 %771
        %774 = vset.pattern.permute.xlu0 3
        %775 = vperm.xlu0 %774, %v528
        %v776 = vpop.permute.xlu0 %775
        %778 = vset.pattern.permute.xlu0 3
        %779 = vperm.xlu0 %778, %v538
        %v780 = vpop.permute.xlu0 %779
        %782 = vset.pattern.permute.xlu0 3
        %783 = vperm.xlu0 %782, %v548
        %v784 = vpop.permute.xlu0 %783
        %v786 = vsel %vm553, %v717, %v756
        %v787 = vsel %vm553, %v722, %v760
        %v788 = vsel %vm553, %v727, %v764
        %v789 = vsel %vm553, %v732, %v768
        %v790 = vsel %vm553, %v737, %v772
        %v791 = vsel %vm553, %v742, %v776
        %v792 = vsel %vm553, %v747, %v780
        %v793 = vsel %vm553, %v752, %v784
        %794 = vset.pattern.permute.xlu0 1
        %795 = vperm.xlu0 %794, %v478
        %v796 = vpop.permute.xlu0 %795
        %798 = vset.pattern.permute.xlu0 1
        %799 = vperm.xlu0 %798, %v488
        %v800 = vpop.permute.xlu0 %799
        %802 = vset.pattern.permute.xlu0 1
        %803 = vperm.xlu0 %802, %v498
        %v804 = vpop.permute.xlu0 %803
        %806 = vset.pattern.permute.xlu0 1
        %807 = vperm.xlu0 %806, %v508
        %v808 = vpop.permute.xlu0 %807
        %810 = vset.pattern.permute.xlu0 1
        %811 = vperm.xlu0 %810, %v518
        %v812 = vpop.permute.xlu0 %811
        %814 = vset.pattern.permute.xlu0 1
        %815 = vperm.xlu0 %814, %v528
        %v816 = vpop.permute.xlu0 %815
        %818 = vset.pattern.permute.xlu0 1
        %819 = vperm.xlu0 %818, %v538
        %v820 = vpop.permute.xlu0 %819
        %822 = vset.pattern.permute.xlu0 1
        %823 = vperm.xlu0 %822, %v548
        %v824 = vpop.permute.xlu0 %823
        %v826 = vsel %vm552, %v796, %v786
        %v827 = vsel %vm552, %v800, %v787
        %v828 = vsel %vm552, %v804, %v788
        %v829 = vsel %vm552, %v808, %v789
        %v830 = vsel %vm552, %v812, %v790
        %v831 = vsel %vm552, %v816, %v791
        %v832 = vsel %vm552, %v820, %v792
        %v833 = vsel %vm552, %v824, %v793
        %834 = vset.pattern.permute.xlu0 0
        %835 = vperm.xlu0 %834, %v478
        %v836 = vpop.permute.xlu0 %835
        %838 = vset.pattern.permute.xlu0 0
        %839 = vperm.xlu0 %838, %v488
        %v840 = vpop.permute.xlu0 %839
        %842 = vset.pattern.permute.xlu0 0
        %843 = vperm.xlu0 %842, %v498
        %v844 = vpop.permute.xlu0 %843
        %846 = vset.pattern.permute.xlu0 0
        %847 = vperm.xlu0 %846, %v508
        %v848 = vpop.permute.xlu0 %847
        %850 = vset.pattern.permute.xlu0 0
        %851 = vperm.xlu0 %850, %v518
        %v852 = vpop.permute.xlu0 %851
        %854 = vset.pattern.permute.xlu0 0
        %855 = vperm.xlu0 %854, %v528
        %v856 = vpop.permute.xlu0 %855
        %858 = vset.pattern.permute.xlu0 0
        %859 = vperm.xlu0 %858, %v538
        %v860 = vpop.permute.xlu0 %859
        %862 = vset.pattern.permute.xlu0 0
        %863 = vperm.xlu0 %862, %v548
        %v864 = vpop.permute.xlu0 %863
        %v866 = vsel %vm551, %v836, %v826
        %v867 = vsel %vm551, %v840, %v827
        %v868 = vsel %vm551, %v844, %v828
        %v869 = vsel %vm551, %v848, %v829
        %v870 = vsel %vm551, %v852, %v830
        %v871 = vsel %vm551, %v856, %v831
        %v872 = vsel %vm551, %v860, %v832
        %v873 = vsel %vm551, %v864, %v833
        %v874 = vsub.f32 %v308, %v706
        %v875 = vsub.f32 %v311, %v707
        %v876 = vsub.f32 %v314, %v708
        %v877 = vsub.f32 %v317, %v709
        %v878 = vsub.f32 %v320, %v710
        %v879 = vsub.f32 %v323, %v711
        %v880 = vsub.f32 %v326, %v712
        %v881 = vsub.f32 %v329, %v713
        %v882 = vmul.f32 %v874, %v866
        %v883 = vmul.f32 %v875, %v867
        %v884 = vmul.f32 %v876, %v868
        %v885 = vmul.f32 %v877, %v869
        %v886 = vmul.f32 %v878, %v870
        %v887 = vmul.f32 %v879, %v871
        %v888 = vmul.f32 %v880, %v872
        %v889 = vmul.f32 %v881, %v873
        %v890 = vld [vmem:[%s4] sm:$0x1]
        %v892 = vperm.slane %v890, 0
        %v894 = vmul.f32 %v882, %v892
        %v895 = vmul.f32 %v883, %v892
        %v896 = vmul.f32 %v884, %v892
        %v897 = vmul.f32 %v885, %v892
        %v898 = vmul.f32 %v886, %v892
        %v899 = vmul.f32 %v887, %v892
        %v900 = vmul.f32 %v888, %v892
        %v901 = vmul.f32 %v889, %v892
        %v902 = vld [vmem:[%s5] sm:$0x1]
        %v904 = vperm.slane %v902, 0
        %v906 = vadd.f32 %v894, %v904
        %v907 = vadd.f32 %v895, %v904
        %v908 = vadd.f32 %v896, %v904
        %v909 = vadd.f32 %v897, %v904
        %v910 = vadd.f32 %v898, %v904
        %v911 = vadd.f32 %v899, %v904
        %v912 = vadd.f32 %v900, %v904
        %v913 = vadd.f32 %v901, %v904
        %914 = vst.msk [vmem:[%s245] sm:$0xff] %vm265, %v906
        %915 = vst.msk [vmem:[%s245 + $0x10] sm:$0xff] %vm265, %v907
        %916 = vst.msk [vmem:[%s245 + $0x20] sm:$0xff] %vm265, %v908
        %917 = vst.msk [vmem:[%s245 + $0x30] sm:$0xff] %vm265, %v909
        %918 = vst.msk [vmem:[%s245 + $0x40] sm:$0xff] %vm265, %v910
        %919 = vst.msk [vmem:[%s245 + $0x50] sm:$0xff] %vm265, %v911
        %920 = vst.msk [vmem:[%s245 + $0x60] sm:$0xff] %vm265, %v912
        %921 = vst.msk [vmem:[%s245 + $0x70] sm:$0xff] %vm265, %v913
        %930 = vrot.lane.b32.xlu0 %v906, 96
        %v931 = vpop.permute.xlu0 %930
        %932 = vrot.lane.b32.xlu0 %v907, 96
        %v933 = vpop.permute.xlu0 %932
        %934 = vrot.lane.b32.xlu0 %v908, 96
        %v935 = vpop.permute.xlu0 %934
        %936 = vrot.lane.b32.xlu0 %v909, 96
        %v937 = vpop.permute.xlu0 %936
        %938 = vrot.lane.b32.xlu0 %v910, 96
        %v939 = vpop.permute.xlu0 %938
        %940 = vrot.lane.b32.xlu0 %v911, 96
        %v941 = vpop.permute.xlu0 %940
        %942 = vrot.lane.b32.xlu0 %v912, 96
        %v943 = vpop.permute.xlu0 %942
        %944 = vrot.lane.b32.xlu0 %v913, 96
        %v945 = vpop.permute.xlu0 %944
        %s954 = scalar_lea.vmem %s245, 8 [#allocation2]
        %955 = vst.msk [vmem:[%s954] sm:$0xff] %vm265, %v931
        %956 = vst.msk [vmem:[%s954 + $0x10] sm:$0xff] %vm265, %v933
        %957 = vst.msk [vmem:[%s954 + $0x20] sm:$0xff] %vm265, %v935
        %958 = vst.msk [vmem:[%s954 + $0x30] sm:$0xff] %vm265, %v937
        %959 = vst.msk [vmem:[%s954 + $0x40] sm:$0xff] %vm265, %v939
        %960 = vst.msk [vmem:[%s954 + $0x50] sm:$0xff] %vm265, %v941
        %961 = vst.msk [vmem:[%s954 + $0x60] sm:$0xff] %vm265, %v943
        %962 = vst.msk [vmem:[%s954 + $0x70] sm:$0xff] %vm265, %v945
        %s963 = sand.u32 %s159, 1
        %s964 = scalar_lea.sflag [#allocation3], %s963
        %s965 = sand.u32 %s159, 1
        %s966 = smul.addr %s965, 128
        %s967 = scalar_lea.vmem [#allocation2], %s966
        // Predicated region
        $region45: #{tpu_custom_call.1} parent=43 // pred_check
          %p968 = pneg %p169
        $region46: #{tpu_custom_call.1} parent=43 // pred_check_branch
          %970 = sbr.rel (%p968) target = $region48
        $region47: #{tpu_custom_call.1} parent=43 // pred_region
          %s971 = smul.u32 8, %s20
          %973 = vsyncadd %s964, 0
          %s974 = smul.addr %s971, 2
          %s975 = smul.addr %s974, 8
          %s976 = scalar_lea.hbm %s6, %s975
          %s977 = sshll.u32 %s967, 4
          %s978 = int_to_ptr.vmem [resolvable:$true] %s977
          %s979 = sshll.u32 %s976, 4
          %s980 = int_to_ptr.hbm [resolvable:$true] %s979
          %985 = dma.vmem_to_hbm [thread:$0]  %s978, 2048, %s980, %s964, 128, 128, 8
        $region48: #{tpu_custom_call.1} parent=43 // pred_fallthru
          _
      $region44: #{tpu_custom_call.1} parent=5 // pred_fallthru
        _
      %p986 = scmp.le.s32.totalorder 2, %s15
      // Predicated region
      $region49: #{tpu_custom_call.1} parent=5 // pred_check
        %p987 = pneg %p986
      $region50: #{tpu_custom_call.1} parent=5 // pred_check_branch
        %989 = sbr.rel (%p987) target = $region52
      $region51: #{tpu_custom_call.1} parent=5 // pred_region
        %s990 = ssub.s32 %s15, 2
        // Predicated region
        $region53: #{tpu_custom_call.1} parent=51 // pred_check
          %p991 = pneg %p175
        $region54: #{tpu_custom_call.1} parent=51 // pred_check_branch
          %993 = sbr.rel (%p991) target = $region56
        $region55: #{tpu_custom_call.1} parent=51 // pred_region
          %s994 = sand.u32 %s160, 1
          %s995 = scalar_lea.sflag [#allocation3], %s994
          %s996 = sand.u32 %s160, 1
          %s997 = smul.addr %s996, 128
          %s998 = scalar_lea.vmem [#allocation2], %s997
          %1000 = dma.done %s995, 2048
        $region56: #{tpu_custom_call.1} parent=51 // pred_fallthru
          _
      $region52: #{tpu_custom_call.1} parent=5 // pred_fallthru
        _
    $region6: #{tpu_custom_call.1} parent=1 // loop_footer
      %s19 = sadd.s32 1, %s15
    $region7: #{tpu_custom_call.1} parent=1 // loop_footer_branch
      %14 = sbr.rel target = $region3
    $region8: #{tpu_custom_call.1} parent=1 // loop_exit
      _
    %1001 = vsyncpa [#allocation3], 1
    %s1002 = scalar_lea.sflag [#allocation3], 1
    %1003 = vsyncpa %s1002, 1

</llo_original>
